<compile_context>
chip_gen: v6e
topology: v6e:2x2x1
jax: 0.10.0
libtpu: 0.0.40
codegen_flags: <defaults>
</compile_context>

<pallas_src>
import functools

import jax
import jax.numpy as jnp
from jax.experimental import pallas as pl
from jax.experimental.pallas import tpu as pltpu

EPS = 1e-5

# Parameter packing (18 scalars):
#   [0] conv1.w   [1] conv1.b
#   [2:11] conv2.w (3x3 row-major)   [11] conv2.b
#   [12] bn2.gamma [13] bn2.beta
#   [14] conv_res.w [15] conv_res.b
#   [16] bn_res.gamma [17] bn_res.beta


def _conv3x3_flat(out1, wmask_ref, shifts):
    """Bias-free 3x3 'same' conv on row-major flattened images.

    out1:      (tb, H*W) activations.
    wmask_ref: (9, H*W) VMEM ref; wmask[k] = conv2.w[dy,dx] * validity(dy,dx)
               (zero wherever the tap would read across an image edge, so the
               circular roll wrap-around never contributes).
    shifts:    9 static non-negative lane-roll amounts.
    """
    acc = out1 * wmask_ref[4, :]                         # centre tap, no shift
    for k in range(9):
        if k == 4:
            continue
        shifted = jnp.roll(out1, shifts[k], axis=-1)     # static lane rotation
        acc = acc + shifted * wmask_ref[k, :]
    return acc


def _stats_kernel(consts_ref, wmask_ref, x_ref, stats_ref, *, shifts):
    """Accumulate [sum(c2), sum(c2^2), sum(x), sum(x^2)] across the batch grid."""
    @pl.when(pl.program_id(0) == 0)
    def _init():
        for i in range(4):
            stats_ref[i] = jnp.float32(0.0)

    x = x_ref[...]
    out1 = jnp.maximum(x * consts_ref[0] + consts_ref[1], 0.0)   # relu(conv1)
    conv2 = _conv3x3_flat(out1, wmask_ref, shifts)               # bias dropped

    stats_ref[0] = stats_ref[0] + jnp.sum(conv2)
    stats_ref[1] = stats_ref[1] + jnp.sum(conv2 * conv2)
    stats_ref[2] = stats_ref[2] + jnp.sum(x)
    stats_ref[3] = stats_ref[3] + jnp.sum(x * x)


def _apply_kernel(consts_ref, wmask_ref, x_ref, out_ref, *, shifts):
    """out = relu(relu(conv2*s2 + t2) + (x*sr + tr)) with folded BN affines."""
    x = x_ref[...]
    out1 = jnp.maximum(x * consts_ref[0] + consts_ref[1], 0.0)
    conv2 = _conv3x3_flat(out1, wmask_ref, shifts)
    main = jnp.maximum(conv2 * consts_ref[2] + consts_ref[3], 0.0)
    res = x * consts_ref[4] + consts_ref[5]
    out_ref[...] = jnp.maximum(main + res, 0.0)


def _pick_batch_tile(B, HW, budget_bytes=4 * 1024 * 1024):
    """Largest batch tile dividing B with <= budget f32 bytes per block; prefer
    multiples of 8 so the sublane block dim stays (8,128)-friendly."""
    budget = max(1, budget_bytes // (4 * HW))
    if B <= budget:
        return B
    divisors = [d for d in range(1, B + 1) if B % d == 0 and d <= budget]
    mult8 = [d for d in divisors if d % 8 == 0]
    return max(mult8) if mult8 else max(divisors)


@jax.jit
def local_module_forward(x, params):
    B, H, W = x.shape
    HW = H * W
    x2 = x.reshape(B, HW).astype(jnp.float32)

    w1, b1 = params[0], params[1]
    w2 = params[2:11]
    # params[11] (conv2.b) and params[15] (conv_res.b) cancel exactly through
    # the training-mode BN mean subtraction, so they never enter the kernels.
    g2, be2 = params[12], params[13]
    wr = params[14]
    gr, ber = params[16], params[17]

    # Per-tap edge-validity masks with the conv2 weight folded in: (9, H*W).
    r = jnp.arange(HW, dtype=jnp.int32) // W
    c = jnp.arange(HW, dtype=jnp.int32) % W
    ones = jnp.ones((HW,), dtype=bool)
    rmask = jnp.stack([r >= 1, ones, r <= H - 2])          # dy = 0, 1, 2
    cmask = jnp.stack([c >= 1, ones, c <= W - 2])          # dx = 0, 1, 2
    valid = (rmask[:, None, :] & cmask[None, :, :]).reshape(9, HW)
    wmask = valid.astype(jnp.float32) * w2[:, None]

    # Flattened-image tap offset s = (dy-1)*W + (dx-1); roll shift = (-s) mod HW.
    shifts = tuple((-((dy - 1) * W + (dx - 1))) % HW
                   for dy in range(3) for dx in range(3))

    tb = _pick_batch_tile(B, HW)
    nb = B // tb

    wmask_spec = pl.BlockSpec((9, HW), lambda i: (0, 0))
    x_spec = pl.BlockSpec((tb, HW), lambda i: (i, 0))
    smem_spec = pl.BlockSpec(memory_space=pltpu.MemorySpace.SMEM)

    # ---- pass 1: global batch statistics -------------------------------------
    conv_consts = jnp.stack([w1, b1]).astype(jnp.float32)
    stats = pl.pallas_call(
        functools.partial(_stats_kernel, shifts=shifts),
        out_shape=jax.ShapeDtypeStruct((4,), jnp.float32),
        grid=(nb,),
        in_specs=[smem_spec, wmask_spec, x_spec],
        out_specs=smem_spec,
        compiler_params=pltpu.CompilerParams(
            dimension_semantics=("arbitrary",)),   # shared SMEM accumulator
    )(conv_consts, wmask, x2)

    # ---- fold both BatchNorms into scalar affines (done once, in the wrapper) -
    n = jnp.float32(B * HW)
    mean2 = stats[0] / n
    var2 = jnp.maximum(stats[1] / n - mean2 * mean2, 0.0)
    meanx = stats[2] / n
    varx = jnp.maximum(stats[3] / n - meanx * meanx, 0.0)

    s2 = g2 * jax.lax.rsqrt(var2 + EPS)
    t2 = be2 - s2 * mean2
    sr = wr * gr * jax.lax.rsqrt(wr * wr * varx + EPS)
    tr = ber - sr * meanx

    apply_consts = jnp.stack([w1, b1, s2, t2, sr, tr]).astype(jnp.float32)

    # ---- pass 2: normalize + residual + ReLU ----------------------------------
    out2 = pl.pallas_call(
        functools.partial(_apply_kernel, shifts=shifts),
        out_shape=jax.ShapeDtypeStruct((B, HW), jnp.float32),
        grid=(nb,),
        in_specs=[smem_spec, wmask_spec, x_spec],
        out_specs=pl.BlockSpec((tb, HW), lambda i: (i, 0)),
        compiler_params=pltpu.CompilerParams(
            dimension_semantics=("parallel",)),    # batch tiles are independent
    )(apply_consts, wmask, x2)

    return out2.reshape(B, H, W)


def ref_forward(x, params):
    """Pure-JAX reference mirroring the PyTorch forward (training-mode BN)."""
    B, H, W = x.shape
    w1, b1 = params[0], params[1]
    w2 = params[2:11].reshape(3, 3)
    b2 = params[11]
    g2, be2 = params[12], params[13]
    wr, br = params[14], params[15]
    gr, ber = params[16], params[17]

    out1 = jnp.maximum(x * w1 + b1, 0.0)
    xp = jnp.pad(out1, ((0, 0), (1, 1), (1, 1)))
    acc = jnp.zeros_like(x)
    for dy in range(3):
        for dx in range(3):
            acc = acc + w2[dy, dx] * xp[:, dy:dy + H, dx:dx + W]
    conv2_out = acc + b2
    m2 = jnp.mean(conv2_out)
    v2 = jnp.mean((conv2_out - m2) ** 2)
    bn2 = (conv2_out - m2) / jnp.sqrt(v2 + EPS) * g2 + be2
    main = jnp.maximum(bn2, 0.0)

    res = x * wr + br
    mr = jnp.mean(res)
    vr = jnp.mean((res - mr) ** 2)
    bnr = (res - mr) / jnp.sqrt(vr + EPS) * gr + ber
    return jnp.maximum(main + bnr, 0.0)


def make_params(key):
    """Deterministic synthetic parameters (shapes match Local_module.__init__)."""
    k1, k2, k3, k4, k5, k6 = jax.random.split(key, 6)
    conv1_w = jax.random.uniform(k1, (), minval=-1.0, maxval=1.0)
    conv1_b = jax.random.uniform(k2, (), minval=-0.5, maxval=0.5)
    conv2_w = jax.random.uniform(k3, (9,), minval=-1.0 / 3, maxval=1.0 / 3)
    conv2_b = jax.random.uniform(k4, (), minval=-1.0 / 3, maxval=1.0 / 3)
    convr_w = jax.random.uniform(k5, (), minval=-1.0, maxval=1.0)
    convr_b = jax.random.uniform(k6, (), minval=-0.5, maxval=0.5)
    bn2_gamma, bn2_beta = jnp.float32(1.0), jnp.float32(0.0)
    bnr_gamma, bnr_beta = jnp.float32(1.0), jnp.float32(0.0)
    params = jnp.concatenate([
        jnp.stack([conv1_w, conv1_b]),
        conv2_w,
        jnp.stack([conv2_b, bn2_gamma, bn2_beta, convr_w, convr_b,
                   bnr_gamma, bnr_beta]),
    ]).astype(jnp.float32)
    assert params.shape == (18,)
    return params


if __name__ == "__main__":
    key = jax.random.PRNGKey(0)
    kx, kp = jax.random.split(key)

    B, H, W = 2, 16, 16           # enc_inputs: (B, H, W); torch unsqueezes C=1
    x = jax.random.normal(kx, (B, H, W), dtype=jnp.float32)
    params = make_params(kp)

    out = local_module_forward(x, params)
    out = jax.block_until_ready(out)

    ref = ref_forward(x, params)
    assert out.shape == (B, H, W)
    # f32 whole-batch BN reductions are computed in a different order (and with
    # the folded single-pass variance) than the reference, so allow a few 1e-4
    # of slack — well above the observed ~1e-4 rounding-level differences.
    max_err = jnp.max(jnp.abs(out - ref))
    assert jnp.allclose(out, ref, atol=2e-3, rtol=2e-3), f"max abs err {max_err}"

    print("KERNEL_OK")
</pallas_src>

<mosaic_0001>
module attributes {stable_mosaic.version = 11 : i64} {
  func.func @_stats_kernel(%arg0: i32, %arg1: memref<2xf32, #tpu.memory_space<smem>>, %arg2: memref<9x256xf32, #tpu.memory_space<vmem>>, %arg3: memref<2x256xf32, #tpu.memory_space<vmem>>, %arg4: memref<4xf32, #tpu.memory_space<smem>>) attributes {dimension_semantics = [#tpu.dimension_semantics<arbitrary>], iteration_bounds = array<i64: 1>, scalar_prefetch = 0 : i64, scratch_operands = 0 : i64, tpu.core_type = #tpu.core_type<tc>, window_params = [{transform_indices = @transform_0, window_bounds = array<i64: 2>}, {pipeline_mode = #tpu.pipeline_mode<synchronous>, transform_indices = @transform_1, window_bounds = array<i64: 9, 256>}, {transform_indices = @transform_2, window_bounds = array<i64: 2, 256>}, {transform_indices = @transform_3, window_bounds = array<i64: 4>}]} {
    %c0_i32 = arith.constant 0 : i32
    %0 = arith.cmpi eq, %arg0, %c0_i32 : i32
    %1 = arith.extui %0 : i1 to i32
    %c0_i32_0 = arith.constant 0 : i32
    %2 = arith.cmpi ne, %1, %c0_i32_0 : i32
    scf.if %2 {
      %cst_26 = arith.constant 0.000000e+00 : f32
      %c0_27 = arith.constant 0 : index
      %119 = memref.load %arg4[%c0_27] : memref<4xf32, #tpu.memory_space<smem>>
      memref.store %cst_26, %arg4[%c0_27] : memref<4xf32, #tpu.memory_space<smem>>
      %cst_28 = arith.constant 0.000000e+00 : f32
      %c1_29 = arith.constant 1 : index
      %120 = memref.load %arg4[%c1_29] : memref<4xf32, #tpu.memory_space<smem>>
      memref.store %cst_28, %arg4[%c1_29] : memref<4xf32, #tpu.memory_space<smem>>
      %cst_30 = arith.constant 0.000000e+00 : f32
      %c2_31 = arith.constant 2 : index
      %121 = memref.load %arg4[%c2_31] : memref<4xf32, #tpu.memory_space<smem>>
      memref.store %cst_30, %arg4[%c2_31] : memref<4xf32, #tpu.memory_space<smem>>
      %cst_32 = arith.constant 0.000000e+00 : f32
      %c3_33 = arith.constant 3 : index
      %122 = memref.load %arg4[%c3_33] : memref<4xf32, #tpu.memory_space<smem>>
      memref.store %cst_32, %arg4[%c3_33] : memref<4xf32, #tpu.memory_space<smem>>
    } else {
    }
    %c0 = arith.constant 0 : index
    %c0_1 = arith.constant 0 : index
    %3 = vector.load %arg3[%c0, %c0_1] : memref<2x256xf32, #tpu.memory_space<vmem>>, vector<2x256xf32>
    %c0_2 = arith.constant 0 : index
    %4 = memref.load %arg1[%c0_2] : memref<2xf32, #tpu.memory_space<smem>>
    %5 = vector.broadcast %4 : f32 to vector<2x256xf32>
    %6 = arith.mulf %3, %5 : vector<2x256xf32>
    %c1 = arith.constant 1 : index
    %7 = memref.load %arg1[%c1] : memref<2xf32, #tpu.memory_space<smem>>
    %8 = vector.broadcast %7 : f32 to vector<2x256xf32>
    %9 = arith.addf %6, %8 : vector<2x256xf32>
    %cst = arith.constant 0.000000e+00 : f32
    %10 = vector.broadcast %cst : f32 to vector<2x256xf32>
    %11 = arith.maximumf %9, %10 : vector<2x256xf32>
    %c4 = arith.constant 4 : index
    %c0_3 = arith.constant 0 : index
    %12 = vector.load %arg2[%c4, %c0_3] : memref<9x256xf32, #tpu.memory_space<vmem>>, vector<1x256xf32>
    %13 = vector.shape_cast %12 : vector<1x256xf32> to vector<256xf32>
    %14 = vector.shape_cast %13 : vector<256xf32> to vector<1x256xf32>
    %15 = vector.broadcast %14 : vector<1x256xf32> to vector<2x256xf32>
    %16 = arith.mulf %11, %15 : vector<2x256xf32>
    %17 = vector.extract_strided_slice %11 {offsets = [0, 239], sizes = [2, 17], strides = [1, 1]} : vector<2x256xf32> to vector<2x17xf32>
    %18 = vector.extract_strided_slice %11 {offsets = [0, 0], sizes = [2, 239], strides = [1, 1]} : vector<2x256xf32> to vector<2x239xf32>
    %19 = tpu.concatenate %17, %18 in 1 : vector<2x17xf32>, vector<2x239xf32> -> vector<2x256xf32>
    %c0_4 = arith.constant 0 : index
    %c0_5 = arith.constant 0 : index
    %20 = vector.load %arg2[%c0_4, %c0_5] : memref<9x256xf32, #tpu.memory_space<vmem>>, vector<1x256xf32>
    %21 = vector.shape_cast %20 : vector<1x256xf32> to vector<256xf32>
    %22 = vector.shape_cast %21 : vector<256xf32> to vector<1x256xf32>
    %23 = vector.broadcast %22 : vector<1x256xf32> to vector<2x256xf32>
    %24 = arith.mulf %19, %23 : vector<2x256xf32>
    %25 = arith.addf %16, %24 : vector<2x256xf32>
    %26 = vector.extract_strided_slice %11 {offsets = [0, 240], sizes = [2, 16], strides = [1, 1]} : vector<2x256xf32> to vector<2x16xf32>
    %27 = vector.extract_strided_slice %11 {offsets = [0, 0], sizes = [2, 240], strides = [1, 1]} : vector<2x256xf32> to vector<2x240xf32>
    %28 = tpu.concatenate %26, %27 in 1 : vector<2x16xf32>, vector<2x240xf32> -> vector<2x256xf32>
    %c1_6 = arith.constant 1 : index
    %c0_7 = arith.constant 0 : index
    %29 = vector.load %arg2[%c1_6, %c0_7] : memref<9x256xf32, #tpu.memory_space<vmem>>, vector<1x256xf32>
    %30 = vector.shape_cast %29 : vector<1x256xf32> to vector<256xf32>
    %31 = vector.shape_cast %30 : vector<256xf32> to vector<1x256xf32>
    %32 = vector.broadcast %31 : vector<1x256xf32> to vector<2x256xf32>
    %33 = arith.mulf %28, %32 : vector<2x256xf32>
    %34 = arith.addf %25, %33 : vector<2x256xf32>
    %35 = vector.extract_strided_slice %11 {offsets = [0, 241], sizes = [2, 15], strides = [1, 1]} : vector<2x256xf32> to vector<2x15xf32>
    %36 = vector.extract_strided_slice %11 {offsets = [0, 0], sizes = [2, 241], strides = [1, 1]} : vector<2x256xf32> to vector<2x241xf32>
    %37 = tpu.concatenate %35, %36 in 1 : vector<2x15xf32>, vector<2x241xf32> -> vector<2x256xf32>
    %c2 = arith.constant 2 : index
    %c0_8 = arith.constant 0 : index
    %38 = vector.load %arg2[%c2, %c0_8] : memref<9x256xf32, #tpu.memory_space<vmem>>, vector<1x256xf32>
    %39 = vector.shape_cast %38 : vector<1x256xf32> to vector<256xf32>
    %40 = vector.shape_cast %39 : vector<256xf32> to vector<1x256xf32>
    %41 = vector.broadcast %40 : vector<1x256xf32> to vector<2x256xf32>
    %42 = arith.mulf %37, %41 : vector<2x256xf32>
    %43 = arith.addf %34, %42 : vector<2x256xf32>
    %44 = vector.extract_strided_slice %11 {offsets = [0, 255], sizes = [2, 1], strides = [1, 1]} : vector<2x256xf32> to vector<2x1xf32>
    %45 = vector.extract_strided_slice %11 {offsets = [0, 0], sizes = [2, 255], strides = [1, 1]} : vector<2x256xf32> to vector<2x255xf32>
    %46 = tpu.concatenate %44, %45 in 1 : vector<2x1xf32>, vector<2x255xf32> -> vector<2x256xf32>
    %c3 = arith.constant 3 : index
    %c0_9 = arith.constant 0 : index
    %47 = vector.load %arg2[%c3, %c0_9] : memref<9x256xf32, #tpu.memory_space<vmem>>, vector<1x256xf32>
    %48 = vector.shape_cast %47 : vector<1x256xf32> to vector<256xf32>
    %49 = vector.shape_cast %48 : vector<256xf32> to vector<1x256xf32>
    %50 = vector.broadcast %49 : vector<1x256xf32> to vector<2x256xf32>
    %51 = arith.mulf %46, %50 : vector<2x256xf32>
    %52 = arith.addf %43, %51 : vector<2x256xf32>
    %53 = vector.extract_strided_slice %11 {offsets = [0, 1], sizes = [2, 255], strides = [1, 1]} : vector<2x256xf32> to vector<2x255xf32>
    %54 = vector.extract_strided_slice %11 {offsets = [0, 0], sizes = [2, 1], strides = [1, 1]} : vector<2x256xf32> to vector<2x1xf32>
    %55 = tpu.concatenate %53, %54 in 1 : vector<2x255xf32>, vector<2x1xf32> -> vector<2x256xf32>
    %c5 = arith.constant 5 : index
    %c0_10 = arith.constant 0 : index
    %56 = vector.load %arg2[%c5, %c0_10] : memref<9x256xf32, #tpu.memory_space<vmem>>, vector<1x256xf32>
    %57 = vector.shape_cast %56 : vector<1x256xf32> to vector<256xf32>
    %58 = vector.shape_cast %57 : vector<256xf32> to vector<1x256xf32>
    %59 = vector.broadcast %58 : vector<1x256xf32> to vector<2x256xf32>
    %60 = arith.mulf %55, %59 : vector<2x256xf32>
    %61 = arith.addf %52, %60 : vector<2x256xf32>
    %62 = vector.extract_strided_slice %11 {offsets = [0, 15], sizes = [2, 241], strides = [1, 1]} : vector<2x256xf32> to vector<2x241xf32>
    %63 = vector.extract_strided_slice %11 {offsets = [0, 0], sizes = [2, 15], strides = [1, 1]} : vector<2x256xf32> to vector<2x15xf32>
    %64 = tpu.concatenate %62, %63 in 1 : vector<2x241xf32>, vector<2x15xf32> -> vector<2x256xf32>
    %c6 = arith.constant 6 : index
    %c0_11 = arith.constant 0 : index
    %65 = vector.load %arg2[%c6, %c0_11] : memref<9x256xf32, #tpu.memory_space<vmem>>, vector<1x256xf32>
    %66 = vector.shape_cast %65 : vector<1x256xf32> to vector<256xf32>
    %67 = vector.shape_cast %66 : vector<256xf32> to vector<1x256xf32>
    %68 = vector.broadcast %67 : vector<1x256xf32> to vector<2x256xf32>
    %69 = arith.mulf %64, %68 : vector<2x256xf32>
    %70 = arith.addf %61, %69 : vector<2x256xf32>
    %71 = vector.extract_strided_slice %11 {offsets = [0, 16], sizes = [2, 240], strides = [1, 1]} : vector<2x256xf32> to vector<2x240xf32>
    %72 = vector.extract_strided_slice %11 {offsets = [0, 0], sizes = [2, 16], strides = [1, 1]} : vector<2x256xf32> to vector<2x16xf32>
    %73 = tpu.concatenate %71, %72 in 1 : vector<2x240xf32>, vector<2x16xf32> -> vector<2x256xf32>
    %c7 = arith.constant 7 : index
    %c0_12 = arith.constant 0 : index
    %74 = vector.load %arg2[%c7, %c0_12] : memref<9x256xf32, #tpu.memory_space<vmem>>, vector<1x256xf32>
    %75 = vector.shape_cast %74 : vector<1x256xf32> to vector<256xf32>
    %76 = vector.shape_cast %75 : vector<256xf32> to vector<1x256xf32>
    %77 = vector.broadcast %76 : vector<1x256xf32> to vector<2x256xf32>
    %78 = arith.mulf %73, %77 : vector<2x256xf32>
    %79 = arith.addf %70, %78 : vector<2x256xf32>
    %80 = vector.extract_strided_slice %11 {offsets = [0, 17], sizes = [2, 239], strides = [1, 1]} : vector<2x256xf32> to vector<2x239xf32>
    %81 = vector.extract_strided_slice %11 {offsets = [0, 0], sizes = [2, 17], strides = [1, 1]} : vector<2x256xf32> to vector<2x17xf32>
    %82 = tpu.concatenate %80, %81 in 1 : vector<2x239xf32>, vector<2x17xf32> -> vector<2x256xf32>
    %c8 = arith.constant 8 : index
    %c0_13 = arith.constant 0 : index
    %83 = vector.load %arg2[%c8, %c0_13] : memref<9x256xf32, #tpu.memory_space<vmem>>, vector<1x256xf32>
    %84 = vector.shape_cast %83 : vector<1x256xf32> to vector<256xf32>
    %85 = vector.shape_cast %84 : vector<256xf32> to vector<1x256xf32>
    %86 = vector.broadcast %85 : vector<1x256xf32> to vector<2x256xf32>
    %87 = arith.mulf %82, %86 : vector<2x256xf32>
    %88 = arith.addf %79, %87 : vector<2x256xf32>
    %c0_14 = arith.constant 0 : index
    %89 = memref.load %arg4[%c0_14] : memref<4xf32, #tpu.memory_space<smem>>
    %90 = vector.shape_cast %88 : vector<2x256xf32> to vector<1x2x256xf32>
    %cst_15 = arith.constant dense<0.000000e+00> : vector<1xf32>
    %91 = vector.multi_reduction <add>, %90, %cst_15 [1, 2] : vector<1x2x256xf32> to vector<1xf32>
    %92 = vector.shape_cast %91 : vector<1xf32> to vector<1x1x1xf32>
    %93 = vector.extract %92[0, 0, 0] : f32 from vector<1x1x1xf32>
    %94 = arith.addf %89, %93 : f32
    %c0_16 = arith.constant 0 : index
    %95 = memref.load %arg4[%c0_16] : memref<4xf32, #tpu.memory_space<smem>>
    memref.store %94, %arg4[%c0_16] : memref<4xf32, #tpu.memory_space<smem>>
    %c1_17 = arith.constant 1 : index
    %96 = memref.load %arg4[%c1_17] : memref<4xf32, #tpu.memory_space<smem>>
    %97 = arith.mulf %88, %88 : vector<2x256xf32>
    %98 = vector.shape_cast %97 : vector<2x256xf32> to vector<1x2x256xf32>
    %cst_18 = arith.constant dense<0.000000e+00> : vector<1xf32>
    %99 = vector.multi_reduction <add>, %98, %cst_18 [1, 2] : vector<1x2x256xf32> to vector<1xf32>
    %100 = vector.shape_cast %99 : vector<1xf32> to vector<1x1x1xf32>
    %101 = vector.extract %100[0, 0, 0] : f32 from vector<1x1x1xf32>
    %102 = arith.addf %96, %101 : f32
    %c1_19 = arith.constant 1 : index
    %103 = memref.load %arg4[%c1_19] : memref<4xf32, #tpu.memory_space<smem>>
    memref.store %102, %arg4[%c1_19] : memref<4xf32, #tpu.memory_space<smem>>
    %c2_20 = arith.constant 2 : index
    %104 = memref.load %arg4[%c2_20] : memref<4xf32, #tpu.memory_space<smem>>
    %105 = vector.shape_cast %3 : vector<2x256xf32> to vector<1x2x256xf32>
    %cst_21 = arith.constant dense<0.000000e+00> : vector<1xf32>
    %106 = vector.multi_reduction <add>, %105, %cst_21 [1, 2] : vector<1x2x256xf32> to vector<1xf32>
    %107 = vector.shape_cast %106 : vector<1xf32> to vector<1x1x1xf32>
    %108 = vector.extract %107[0, 0, 0] : f32 from vector<1x1x1xf32>
    %109 = arith.addf %104, %108 : f32
    %c2_22 = arith.constant 2 : index
    %110 = memref.load %arg4[%c2_22] : memref<4xf32, #tpu.memory_space<smem>>
    memref.store %109, %arg4[%c2_22] : memref<4xf32, #tpu.memory_space<smem>>
    %c3_23 = arith.constant 3 : index
    %111 = memref.load %arg4[%c3_23] : memref<4xf32, #tpu.memory_space<smem>>
    %112 = arith.mulf %3, %3 : vector<2x256xf32>
    %113 = vector.shape_cast %112 : vector<2x256xf32> to vector<1x2x256xf32>
    %cst_24 = arith.constant dense<0.000000e+00> : vector<1xf32>
    %114 = vector.multi_reduction <add>, %113, %cst_24 [1, 2] : vector<1x2x256xf32> to vector<1xf32>
    %115 = vector.shape_cast %114 : vector<1xf32> to vector<1x1x1xf32>
    %116 = vector.extract %115[0, 0, 0] : f32 from vector<1x1x1xf32>
    %117 = arith.addf %111, %116 : f32
    %c3_25 = arith.constant 3 : index
    %118 = memref.load %arg4[%c3_25] : memref<4xf32, #tpu.memory_space<smem>>
    memref.store %117, %arg4[%c3_25] : memref<4xf32, #tpu.memory_space<smem>>
    return
  }
  func.func @transform_0(%arg0: i32) -> i32 {
    %c0_i32 = arith.constant 0 : i32
    %c0_i32_0 = arith.constant 0 : i32
    return %c0_i32 : i32
  }
  func.func @transform_1(%arg0: i32) -> (i32, i32) {
    %c0_i32 = arith.constant 0 : i32
    %c0_i32_0 = arith.constant 0 : i32
    %c0_i32_1 = arith.constant 0 : i32
    return %c0_i32, %c0_i32_0 : i32, i32
  }
  func.func @transform_2(%arg0: i32) -> (i32, i32) {
    %c0_i32 = arith.constant 0 : i32
    %c0_i32_0 = arith.constant 0 : i32
    return %arg0, %c0_i32 : i32, i32
  }
  func.func @transform_3(%arg0: i32) -> i32 {
    %c0_i32 = arith.constant 0 : i32
    %c0_i32_0 = arith.constant 0 : i32
    return %c0_i32 : i32
  }
}

module attributes {stable_mosaic.version = 11 : i64} {
  func.func @_apply_kernel(%arg0: i32, %arg1: memref<6xf32, #tpu.memory_space<smem>>, %arg2: memref<9x256xf32, #tpu.memory_space<vmem>>, %arg3: memref<2x256xf32, #tpu.memory_space<vmem>>, %arg4: memref<2x256xf32, #tpu.memory_space<vmem>>) attributes {dimension_semantics = [#tpu.dimension_semantics<parallel>], iteration_bounds = array<i64: 1>, scalar_prefetch = 0 : i64, scratch_operands = 0 : i64, tpu.core_type = #tpu.core_type<tc>, window_params = [{transform_indices = @transform_0, window_bounds = array<i64: 6>}, {pipeline_mode = #tpu.pipeline_mode<synchronous>, transform_indices = @transform_1, window_bounds = array<i64: 9, 256>}, {transform_indices = @transform_2, window_bounds = array<i64: 2, 256>}, {transform_indices = @transform_3, window_bounds = array<i64: 2, 256>}]} {
    %c0 = arith.constant 0 : index
    %c0_0 = arith.constant 0 : index
    %0 = vector.load %arg3[%c0, %c0_0] : memref<2x256xf32, #tpu.memory_space<vmem>>, vector<2x256xf32>
    %c0_1 = arith.constant 0 : index
    %1 = memref.load %arg1[%c0_1] : memref<6xf32, #tpu.memory_space<smem>>
    %2 = vector.broadcast %1 : f32 to vector<2x256xf32>
    %3 = arith.mulf %0, %2 : vector<2x256xf32>
    %c1 = arith.constant 1 : index
    %4 = memref.load %arg1[%c1] : memref<6xf32, #tpu.memory_space<smem>>
    %5 = vector.broadcast %4 : f32 to vector<2x256xf32>
    %6 = arith.addf %3, %5 : vector<2x256xf32>
    %cst = arith.constant 0.000000e+00 : f32
    %7 = vector.broadcast %cst : f32 to vector<2x256xf32>
    %8 = arith.maximumf %6, %7 : vector<2x256xf32>
    %c4 = arith.constant 4 : index
    %c0_2 = arith.constant 0 : index
    %9 = vector.load %arg2[%c4, %c0_2] : memref<9x256xf32, #tpu.memory_space<vmem>>, vector<1x256xf32>
    %10 = vector.shape_cast %9 : vector<1x256xf32> to vector<256xf32>
    %11 = vector.shape_cast %10 : vector<256xf32> to vector<1x256xf32>
    %12 = vector.broadcast %11 : vector<1x256xf32> to vector<2x256xf32>
    %13 = arith.mulf %8, %12 : vector<2x256xf32>
    %14 = vector.extract_strided_slice %8 {offsets = [0, 239], sizes = [2, 17], strides = [1, 1]} : vector<2x256xf32> to vector<2x17xf32>
    %15 = vector.extract_strided_slice %8 {offsets = [0, 0], sizes = [2, 239], strides = [1, 1]} : vector<2x256xf32> to vector<2x239xf32>
    %16 = tpu.concatenate %14, %15 in 1 : vector<2x17xf32>, vector<2x239xf32> -> vector<2x256xf32>
    %c0_3 = arith.constant 0 : index
    %c0_4 = arith.constant 0 : index
    %17 = vector.load %arg2[%c0_3, %c0_4] : memref<9x256xf32, #tpu.memory_space<vmem>>, vector<1x256xf32>
    %18 = vector.shape_cast %17 : vector<1x256xf32> to vector<256xf32>
    %19 = vector.shape_cast %18 : vector<256xf32> to vector<1x256xf32>
    %20 = vector.broadcast %19 : vector<1x256xf32> to vector<2x256xf32>
    %21 = arith.mulf %16, %20 : vector<2x256xf32>
    %22 = arith.addf %13, %21 : vector<2x256xf32>
    %23 = vector.extract_strided_slice %8 {offsets = [0, 240], sizes = [2, 16], strides = [1, 1]} : vector<2x256xf32> to vector<2x16xf32>
    %24 = vector.extract_strided_slice %8 {offsets = [0, 0], sizes = [2, 240], strides = [1, 1]} : vector<2x256xf32> to vector<2x240xf32>
    %25 = tpu.concatenate %23, %24 in 1 : vector<2x16xf32>, vector<2x240xf32> -> vector<2x256xf32>
    %c1_5 = arith.constant 1 : index
    %c0_6 = arith.constant 0 : index
    %26 = vector.load %arg2[%c1_5, %c0_6] : memref<9x256xf32, #tpu.memory_space<vmem>>, vector<1x256xf32>
    %27 = vector.shape_cast %26 : vector<1x256xf32> to vector<256xf32>
    %28 = vector.shape_cast %27 : vector<256xf32> to vector<1x256xf32>
    %29 = vector.broadcast %28 : vector<1x256xf32> to vector<2x256xf32>
    %30 = arith.mulf %25, %29 : vector<2x256xf32>
    %31 = arith.addf %22, %30 : vector<2x256xf32>
    %32 = vector.extract_strided_slice %8 {offsets = [0, 241], sizes = [2, 15], strides = [1, 1]} : vector<2x256xf32> to vector<2x15xf32>
    %33 = vector.extract_strided_slice %8 {offsets = [0, 0], sizes = [2, 241], strides = [1, 1]} : vector<2x256xf32> to vector<2x241xf32>
    %34 = tpu.concatenate %32, %33 in 1 : vector<2x15xf32>, vector<2x241xf32> -> vector<2x256xf32>
    %c2 = arith.constant 2 : index
    %c0_7 = arith.constant 0 : index
    %35 = vector.load %arg2[%c2, %c0_7] : memref<9x256xf32, #tpu.memory_space<vmem>>, vector<1x256xf32>
    %36 = vector.shape_cast %35 : vector<1x256xf32> to vector<256xf32>
    %37 = vector.shape_cast %36 : vector<256xf32> to vector<1x256xf32>
    %38 = vector.broadcast %37 : vector<1x256xf32> to vector<2x256xf32>
    %39 = arith.mulf %34, %38 : vector<2x256xf32>
    %40 = arith.addf %31, %39 : vector<2x256xf32>
    %41 = vector.extract_strided_slice %8 {offsets = [0, 255], sizes = [2, 1], strides = [1, 1]} : vector<2x256xf32> to vector<2x1xf32>
    %42 = vector.extract_strided_slice %8 {offsets = [0, 0], sizes = [2, 255], strides = [1, 1]} : vector<2x256xf32> to vector<2x255xf32>
    %43 = tpu.concatenate %41, %42 in 1 : vector<2x1xf32>, vector<2x255xf32> -> vector<2x256xf32>
    %c3 = arith.constant 3 : index
    %c0_8 = arith.constant 0 : index
    %44 = vector.load %arg2[%c3, %c0_8] : memref<9x256xf32, #tpu.memory_space<vmem>>, vector<1x256xf32>
    %45 = vector.shape_cast %44 : vector<1x256xf32> to vector<256xf32>
    %46 = vector.shape_cast %45 : vector<256xf32> to vector<1x256xf32>
    %47 = vector.broadcast %46 : vector<1x256xf32> to vector<2x256xf32>
    %48 = arith.mulf %43, %47 : vector<2x256xf32>
    %49 = arith.addf %40, %48 : vector<2x256xf32>
    %50 = vector.extract_strided_slice %8 {offsets = [0, 1], sizes = [2, 255], strides = [1, 1]} : vector<2x256xf32> to vector<2x255xf32>
    %51 = vector.extract_strided_slice %8 {offsets = [0, 0], sizes = [2, 1], strides = [1, 1]} : vector<2x256xf32> to vector<2x1xf32>
    %52 = tpu.concatenate %50, %51 in 1 : vector<2x255xf32>, vector<2x1xf32> -> vector<2x256xf32>
    %c5 = arith.constant 5 : index
    %c0_9 = arith.constant 0 : index
    %53 = vector.load %arg2[%c5, %c0_9] : memref<9x256xf32, #tpu.memory_space<vmem>>, vector<1x256xf32>
    %54 = vector.shape_cast %53 : vector<1x256xf32> to vector<256xf32>
    %55 = vector.shape_cast %54 : vector<256xf32> to vector<1x256xf32>
    %56 = vector.broadcast %55 : vector<1x256xf32> to vector<2x256xf32>
    %57 = arith.mulf %52, %56 : vector<2x256xf32>
    %58 = arith.addf %49, %57 : vector<2x256xf32>
    %59 = vector.extract_strided_slice %8 {offsets = [0, 15], sizes = [2, 241], strides = [1, 1]} : vector<2x256xf32> to vector<2x241xf32>
    %60 = vector.extract_strided_slice %8 {offsets = [0, 0], sizes = [2, 15], strides = [1, 1]} : vector<2x256xf32> to vector<2x15xf32>
    %61 = tpu.concatenate %59, %60 in 1 : vector<2x241xf32>, vector<2x15xf32> -> vector<2x256xf32>
    %c6 = arith.constant 6 : index
    %c0_10 = arith.constant 0 : index
    %62 = vector.load %arg2[%c6, %c0_10] : memref<9x256xf32, #tpu.memory_space<vmem>>, vector<1x256xf32>
    %63 = vector.shape_cast %62 : vector<1x256xf32> to vector<256xf32>
    %64 = vector.shape_cast %63 : vector<256xf32> to vector<1x256xf32>
    %65 = vector.broadcast %64 : vector<1x256xf32> to vector<2x256xf32>
    %66 = arith.mulf %61, %65 : vector<2x256xf32>
    %67 = arith.addf %58, %66 : vector<2x256xf32>
    %68 = vector.extract_strided_slice %8 {offsets = [0, 16], sizes = [2, 240], strides = [1, 1]} : vector<2x256xf32> to vector<2x240xf32>
    %69 = vector.extract_strided_slice %8 {offsets = [0, 0], sizes = [2, 16], strides = [1, 1]} : vector<2x256xf32> to vector<2x16xf32>
    %70 = tpu.concatenate %68, %69 in 1 : vector<2x240xf32>, vector<2x16xf32> -> vector<2x256xf32>
    %c7 = arith.constant 7 : index
    %c0_11 = arith.constant 0 : index
    %71 = vector.load %arg2[%c7, %c0_11] : memref<9x256xf32, #tpu.memory_space<vmem>>, vector<1x256xf32>
    %72 = vector.shape_cast %71 : vector<1x256xf32> to vector<256xf32>
    %73 = vector.shape_cast %72 : vector<256xf32> to vector<1x256xf32>
    %74 = vector.broadcast %73 : vector<1x256xf32> to vector<2x256xf32>
    %75 = arith.mulf %70, %74 : vector<2x256xf32>
    %76 = arith.addf %67, %75 : vector<2x256xf32>
    %77 = vector.extract_strided_slice %8 {offsets = [0, 17], sizes = [2, 239], strides = [1, 1]} : vector<2x256xf32> to vector<2x239xf32>
    %78 = vector.extract_strided_slice %8 {offsets = [0, 0], sizes = [2, 17], strides = [1, 1]} : vector<2x256xf32> to vector<2x17xf32>
    %79 = tpu.concatenate %77, %78 in 1 : vector<2x239xf32>, vector<2x17xf32> -> vector<2x256xf32>
    %c8 = arith.constant 8 : index
    %c0_12 = arith.constant 0 : index
    %80 = vector.load %arg2[%c8, %c0_12] : memref<9x256xf32, #tpu.memory_space<vmem>>, vector<1x256xf32>
    %81 = vector.shape_cast %80 : vector<1x256xf32> to vector<256xf32>
    %82 = vector.shape_cast %81 : vector<256xf32> to vector<1x256xf32>
    %83 = vector.broadcast %82 : vector<1x256xf32> to vector<2x256xf32>
    %84 = arith.mulf %79, %83 : vector<2x256xf32>
    %85 = arith.addf %76, %84 : vector<2x256xf32>
    %c2_13 = arith.constant 2 : index
    %86 = memref.load %arg1[%c2_13] : memref<6xf32, #tpu.memory_space<smem>>
    %87 = vector.broadcast %86 : f32 to vector<2x256xf32>
    %88 = arith.mulf %85, %87 : vector<2x256xf32>
    %c3_14 = arith.constant 3 : index
    %89 = memref.load %arg1[%c3_14] : memref<6xf32, #tpu.memory_space<smem>>
    %90 = vector.broadcast %89 : f32 to vector<2x256xf32>
    %91 = arith.addf %88, %90 : vector<2x256xf32>
    %cst_15 = arith.constant 0.000000e+00 : f32
    %92 = vector.broadcast %cst_15 : f32 to vector<2x256xf32>
    %93 = arith.maximumf %91, %92 : vector<2x256xf32>
    %c4_16 = arith.constant 4 : index
    %94 = memref.load %arg1[%c4_16] : memref<6xf32, #tpu.memory_space<smem>>
    %95 = vector.broadcast %94 : f32 to vector<2x256xf32>
    %96 = arith.mulf %0, %95 : vector<2x256xf32>
    %c5_17 = arith.constant 5 : index
    %97 = memref.load %arg1[%c5_17] : memref<6xf32, #tpu.memory_space<smem>>
    %98 = vector.broadcast %97 : f32 to vector<2x256xf32>
    %99 = arith.addf %96, %98 : vector<2x256xf32>
    %100 = arith.addf %93, %99 : vector<2x256xf32>
    %cst_18 = arith.constant 0.000000e+00 : f32
    %101 = vector.broadcast %cst_18 : f32 to vector<2x256xf32>
    %102 = arith.maximumf %100, %101 : vector<2x256xf32>
    %c0_19 = arith.constant 0 : index
    %c0_20 = arith.constant 0 : index
    %103 = vector.load %arg4[%c0_19, %c0_20] : memref<2x256xf32, #tpu.memory_space<vmem>>, vector<2x256xf32>
    tpu.vector_store %arg4[%c0_19, %c0_20], %102 {strides = array<i32>} : memref<2x256xf32, #tpu.memory_space<vmem>>, vector<2x256xf32>,
    return
  }
  func.func @transform_0(%arg0: i32) -> i32 {
    %c0_i32 = arith.constant 0 : i32
    %c0_i32_0 = arith.constant 0 : i32
    return %c0_i32 : i32
  }
  func.func @transform_1(%arg0: i32) -> (i32, i32) {
    %c0_i32 = arith.constant 0 : i32
    %c0_i32_0 = arith.constant 0 : i32
    %c0_i32_1 = arith.constant 0 : i32
    return %c0_i32, %c0_i32_0 : i32, i32
  }
  func.func @transform_2(%arg0: i32) -> (i32, i32) {
    %c0_i32 = arith.constant 0 : i32
    %c0_i32_0 = arith.constant 0 : i32
    return %arg0, %c0_i32 : i32, i32
  }
  func.func @transform_3(%arg0: i32) -> (i32, i32) {
    %c0_i32 = arith.constant 0 : i32
    %c0_i32_0 = arith.constant 0 : i32
    return %arg0, %c0_i32 : i32, i32
  }
}

</mosaic_0001>

<llo_original>
// kernel: local_module_forward.2
$region0: #{local_module_forward.2}
  #allocation0 [shape = 'u32[]', space=smem, size = 0x4, offset = 0x4, fixed_abs, tag = 'smem constant byte address 0x4 - core index']
  #allocation1 [shape = 'u32[144,128]{1,0:T(1,128)}', space=vmem, size = 0x12000, scoped, tag = 'internal scratch']
  %s0 = inlined_call_operand.vmem [shape: f32[2], index: 0, kind: input, shape index: {}]
  %s1 = inlined_call_operand.vmem [shape: f32[9,256], index: 1, kind: input, shape index: {}]
  %s2 = inlined_call_operand.vmem [shape: f32[2,256], index: 2, kind: input, shape index: {}]
  %s3 = inlined_call_operand.vmem [shape: f32[4], index: 3, kind: output, shape index: {}]
  %s4 = sld [smem:[#allocation0]]
  $region30: #{local_module_forward.2} parent=0
    _
  %s6 = ssub.s32 1, %s4
  %s7 = scalar_select 0, %s6, %s4
  $region1: #{local_module_forward.2} parent=0
    #allocation2 [shape = 'u8[512]{0}', space=smem, size = 0x200, scoped, tag = 'input window, operand 0, single buffered']
    #allocation3 [shape = 's32[1]{0}', space=sflag, size = 0x4, scoped, tag = 'scoped memory for local_module_forward.2']
    #allocation4 [shape = 's32[1]{0}', space=sflag, size = 0x4, scoped, tag = 'scoped memory for local_module_forward.2']
    #allocation5 [shape = 'u8[512]{0}', space=smem, size = 0x200, scoped, tag = 'output window, operand 0, single buffered']
    %8 = vsyncpa [#allocation3], 0
    %9 = vsyncpa [#allocation4], 0
    // Predicated region
    $region2: #{local_module_forward.2} parent=1 // pred_check
      _
    $region3: #{local_module_forward.2} parent=1 // pred_check_branch
      %11 = sbr.rel (0) target = $region5
    $region4: #{local_module_forward.2} parent=1 // pred_region
      %s13 = ssub.s32 16, 16
      %14 = vsyncadd [#allocation3], %s13
      %s16 = sshll.u32 %s0, 4
      %s17 = int_to_ptr.vmem [resolvable:$true] %s16
      %19 = dma.vmem_to_smem %s17, 16, [#allocation2], [#allocation3]
    $region5: #{local_module_forward.2} parent=1 // pred_fallthru
      _
    // Predicated region
    $region6: #{local_module_forward.2} parent=1 // pred_check
      _
    $region7: #{local_module_forward.2} parent=1 // pred_check_branch
      %21 = sbr.rel (0) target = $region9
    $region8: #{local_module_forward.2} parent=1 // pred_region
      _
    $region9: #{local_module_forward.2} parent=1 // pred_fallthru
      _
    // Predicated region
    $region10: #{local_module_forward.2} parent=1 // pred_check
      _
    $region11: #{local_module_forward.2} parent=1 // pred_check_branch
      %23 = sbr.rel (0) target = $region13
    $region12: #{local_module_forward.2} parent=1 // pred_region
      _
    $region13: #{local_module_forward.2} parent=1 // pred_fallthru
      _
    // Predicated region
    $region14: #{local_module_forward.2} parent=1 // pred_check
      _
    $region15: #{local_module_forward.2} parent=1 // pred_check_branch
      %25 = sbr.rel (0) target = $region17
    $region16: #{local_module_forward.2} parent=1 // pred_region
      %26 = dma.done [#allocation3], 16
    $region17: #{local_module_forward.2} parent=1 // pred_fallthru
      _
    %27 = sfence
    %p28 = scmp.eq.s32.totalorder 0, 0
    // Predicated region
    $region18: #{local_module_forward.2} parent=1 // pred_check
      %p29 = pneg %p28
    $region19: #{local_module_forward.2} parent=1 // pred_check_branch
      %31 = sbr.rel (%p29) target = $region21
    $region20: #{local_module_forward.2} parent=1 // pred_region
      %s32 = scalar_lea.smem [#allocation5], 0
      %33 = sst [smem:[%s32]] 0.0
      %s34 = scalar_lea.smem [#allocation5], 1
      %35 = sst [smem:[%s34]] 0.0
      %s36 = scalar_lea.smem [#allocation5], 2
      %37 = sst [smem:[%s36]] 0.0
      %s38 = scalar_lea.smem [#allocation5], 3
      %39 = sst [smem:[%s38]] 0.0
    $region21: #{local_module_forward.2} parent=1 // pred_fallthru
      _
    %v40 = vld [vmem:[%s2] sm:$0xf]
    %s41 = sld [smem:[#allocation2]]
    %v42 = vstv %s41
    %v43 = vmul.f32 %v40, %v42
    %s44 = sld [smem:[#allocation2 + $0x1]]
    %v45 = vstv %s44
    %v46 = vadd.f32 %v43, %v45
    %v47 = vmax.f32 %v46, 0.0
    %s48 = scalar_lea.vmem %s1, 4
    %v49 = vld [vmem:[%s48] ss:$8 sm:$0x3]
    %v51 = vlaneseq
    %v52 = vshrl.u32 %v51, 7
    %v53 = vsub.s32 0, %v52
    %v54 = vrot.slane %v49, %v53
    %v55 = vlaneseq
    %v56 = vshrl.u32 %v55, 7
    %v57 = vsub.s32 1, %v56
    %v58 = vrot.slane %v49, %v57
    %v59 = vcombine.low %v54, %v58
    %v61 = vunpack.c.l.s4 1983009808
    %v62 = vunpack.c.0.s8 %v61
    %v63 = vlaneseq
    %v64 = vshrl.u32 %v63, 7
    %v65 = vsub.s32 %v62, %v64
    %v66 = vrot.slane %v59, %v65
    %v68 = vmul.f32 %v47, %v66
    %v71 = vunpack.c.l.s4 1983009808
    %v72 = vunpack.c.0.s8 %v71
    %v73 = vlaneseq
    %v74 = vshrl.u32 %v73, 7
    %v75 = vsub.s32 %v72, %v74
    %v76 = vrot.slane %v47, %v75
    %v77 = vcombine.high %v76, %v76
    %78 = vrot.lane.b32.xlu0 %v77, 17
    %v79 = vpop.permute.xlu0 %78
    %81 = vrot.lane.b32.xlu0 %v76, 17
    %v82 = vpop.permute.xlu0 %81
    %vm83 = vcmask 138240
    %v84 = vsel %vm83, %v82, %v79
    %v87 = vsel %vm83, %v79, %v82
    %v88 = vld [vmem:[%s1] ss:$8 sm:$0x3]
    %v90 = vlaneseq
    %v91 = vshrl.u32 %v90, 7
    %v92 = vsub.s32 0, %v91
    %v93 = vrot.slane %v88, %v92
    %v94 = vlaneseq
    %v95 = vshrl.u32 %v94, 7
    %v96 = vsub.s32 1, %v95
    %v97 = vrot.slane %v88, %v96
    %v100 = vmul.f32 %v87, %v93
    %v101 = vmul.f32 %v84, %v97
    %v104 = vcombine.low %v100, %v101
    %v106 = vunpack.c.l.s4 1983009808
    %v107 = vunpack.c.0.s8 %v106
    %v108 = vlaneseq
    %v109 = vshrl.u32 %v108, 7
    %v110 = vsub.s32 %v107, %v109
    %v111 = vrot.slane %v104, %v110
    %v113 = vadd.f32 %v68, %v111
    %114 = vrot.lane.b32.xlu0 %v77, 16
    %v115 = vpop.permute.xlu0 %114
    %117 = vrot.lane.b32.xlu0 %v76, 16
    %v118 = vpop.permute.xlu0 %117
    %vm119 = vcmask 130048
    %v120 = vsel %vm119, %v118, %v115
    %v123 = vsel %vm119, %v115, %v118
    %s124 = scalar_lea.vmem %s1, 1
    %v125 = vld [vmem:[%s124] ss:$8 sm:$0x3]
    %v127 = vlaneseq
    %v128 = vshrl.u32 %v127, 7
    %v129 = vsub.s32 0, %v128
    %v130 = vrot.slane %v125, %v129
    %v131 = vlaneseq
    %v132 = vshrl.u32 %v131, 7
    %v133 = vsub.s32 1, %v132
    %v134 = vrot.slane %v125, %v133
    %v137 = vmul.f32 %v123, %v130
    %v138 = vmul.f32 %v120, %v134
    %v141 = vcombine.low %v137, %v138
    %v143 = vunpack.c.l.s4 1983009808
    %v144 = vunpack.c.0.s8 %v143
    %v145 = vlaneseq
    %v146 = vshrl.u32 %v145, 7
    %v147 = vsub.s32 %v144, %v146
    %v148 = vrot.slane %v141, %v147
    %v150 = vadd.f32 %v113, %v148
    %151 = vrot.lane.b32.xlu0 %v77, 15
    %v152 = vpop.permute.xlu0 %151
    %154 = vrot.lane.b32.xlu0 %v76, 15
    %v155 = vpop.permute.xlu0 %154
    %vm156 = vcmask 121856
    %v157 = vsel %vm156, %v155, %v152
    %v160 = vsel %vm156, %v152, %v155
    %s161 = scalar_lea.vmem %s1, 2
    %v162 = vld [vmem:[%s161] ss:$8 sm:$0x3]
    %v164 = vlaneseq
    %v165 = vshrl.u32 %v164, 7
    %v166 = vsub.s32 0, %v165
    %v167 = vrot.slane %v162, %v166
    %v168 = vlaneseq
    %v169 = vshrl.u32 %v168, 7
    %v170 = vsub.s32 1, %v169
    %v171 = vrot.slane %v162, %v170
    %v174 = vmul.f32 %v160, %v167
    %v175 = vmul.f32 %v157, %v171
    %v178 = vcombine.low %v174, %v175
    %v180 = vunpack.c.l.s4 1983009808
    %v181 = vunpack.c.0.s8 %v180
    %v182 = vlaneseq
    %v183 = vshrl.u32 %v182, 7
    %v184 = vsub.s32 %v181, %v183
    %v185 = vrot.slane %v178, %v184
    %v187 = vadd.f32 %v150, %v185
    %188 = vrot.lane.b32.xlu0 %v77, 1
    %v189 = vpop.permute.xlu0 %188
    %191 = vrot.lane.b32.xlu0 %v76, 1
    %v192 = vpop.permute.xlu0 %191
    %vm193 = vcmask 7168
    %v194 = vsel %vm193, %v192, %v189
    %v197 = vsel %vm193, %v189, %v192
    %s198 = scalar_lea.vmem %s1, 3
    %v199 = vld [vmem:[%s198] ss:$8 sm:$0x3]
    %v201 = vlaneseq
    %v202 = vshrl.u32 %v201, 7
    %v203 = vsub.s32 0, %v202
    %v204 = vrot.slane %v199, %v203
    %v205 = vlaneseq
    %v206 = vshrl.u32 %v205, 7
    %v207 = vsub.s32 1, %v206
    %v208 = vrot.slane %v199, %v207
    %v211 = vmul.f32 %v197, %v204
    %v212 = vmul.f32 %v194, %v208
    %v215 = vcombine.low %v211, %v212
    %v217 = vunpack.c.l.s4 1983009808
    %v218 = vunpack.c.0.s8 %v217
    %v219 = vlaneseq
    %v220 = vshrl.u32 %v219, 7
    %v221 = vsub.s32 %v218, %v220
    %v222 = vrot.slane %v215, %v221
    %v224 = vadd.f32 %v187, %v222
    %225 = vrot.lane.b32.xlu0 %v76, 127
    %v226 = vpop.permute.xlu0 %225
    %227 = vrot.lane.b32.xlu0 %v77, 127
    %v228 = vpop.permute.xlu0 %227
    %vm229 = vcmask 1039360
    %v230 = vsel %vm229, %v226, %v228
    %v234 = vsel %vm229, %v228, %v226
    %s235 = scalar_lea.vmem %s1, 5
    %v236 = vld [vmem:[%s235] ss:$8 sm:$0x3]
    %v238 = vlaneseq
    %v239 = vshrl.u32 %v238, 7
    %v240 = vsub.s32 0, %v239
    %v241 = vrot.slane %v236, %v240
    %v242 = vlaneseq
    %v243 = vshrl.u32 %v242, 7
    %v244 = vsub.s32 1, %v243
    %v245 = vrot.slane %v236, %v244
    %v248 = vmul.f32 %v230, %v241
    %v249 = vmul.f32 %v234, %v245
    %v252 = vcombine.low %v248, %v249
    %v254 = vunpack.c.l.s4 1983009808
    %v255 = vunpack.c.0.s8 %v254
    %v256 = vlaneseq
    %v257 = vshrl.u32 %v256, 7
    %v258 = vsub.s32 %v255, %v257
    %v259 = vrot.slane %v252, %v258
    %v261 = vadd.f32 %v224, %v259
    %262 = vrot.lane.b32.xlu0 %v76, 113
    %v263 = vpop.permute.xlu0 %262
    %264 = vrot.lane.b32.xlu0 %v77, 113
    %v265 = vpop.permute.xlu0 %264
    %vm266 = vcmask 924672
    %v267 = vsel %vm266, %v263, %v265
    %v271 = vsel %vm266, %v265, %v263
    %s272 = scalar_lea.vmem %s1, 6
    %v273 = vld [vmem:[%s272] ss:$8 sm:$0x3]
    %v275 = vlaneseq
    %v276 = vshrl.u32 %v275, 7
    %v277 = vsub.s32 0, %v276
    %v278 = vrot.slane %v273, %v277
    %v279 = vlaneseq
    %v280 = vshrl.u32 %v279, 7
    %v281 = vsub.s32 1, %v280
    %v282 = vrot.slane %v273, %v281
    %v285 = vmul.f32 %v267, %v278
    %v286 = vmul.f32 %v271, %v282
    %v289 = vcombine.low %v285, %v286
    %v291 = vunpack.c.l.s4 1983009808
    %v292 = vunpack.c.0.s8 %v291
    %v293 = vlaneseq
    %v294 = vshrl.u32 %v293, 7
    %v295 = vsub.s32 %v292, %v294
    %v296 = vrot.slane %v289, %v295
    %v298 = vadd.f32 %v261, %v296
    %299 = vrot.lane.b32.xlu0 %v76, 112
    %v300 = vpop.permute.xlu0 %299
    %301 = vrot.lane.b32.xlu0 %v77, 112
    %v302 = vpop.permute.xlu0 %301
    %vm303 = vcmask 916480
    %v304 = vsel %vm303, %v300, %v302
    %v308 = vsel %vm303, %v302, %v300
    %s309 = scalar_lea.vmem %s1, 7
    %v310 = vld [vmem:[%s309] ss:$8 sm:$0x3]
    %v312 = vlaneseq
    %v313 = vshrl.u32 %v312, 7
    %v314 = vsub.s32 0, %v313
    %v315 = vrot.slane %v310, %v314
    %v316 = vlaneseq
    %v317 = vshrl.u32 %v316, 7
    %v318 = vsub.s32 1, %v317
    %v319 = vrot.slane %v310, %v318
    %v322 = vmul.f32 %v304, %v315
    %v323 = vmul.f32 %v308, %v319
    %v326 = vcombine.low %v322, %v323
    %v328 = vunpack.c.l.s4 1983009808
    %v329 = vunpack.c.0.s8 %v328
    %v330 = vlaneseq
    %v331 = vshrl.u32 %v330, 7
    %v332 = vsub.s32 %v329, %v331
    %v333 = vrot.slane %v326, %v332
    %v335 = vadd.f32 %v298, %v333
    %336 = vrot.lane.b32.xlu0 %v76, 111
    %v337 = vpop.permute.xlu0 %336
    %338 = vrot.lane.b32.xlu0 %v77, 111
    %v339 = vpop.permute.xlu0 %338
    %vm340 = vcmask 908288
    %v341 = vsel %vm340, %v337, %v339
    %v345 = vsel %vm340, %v339, %v337
    %s346 = scalar_lea.vmem %s1, 16
    %v347 = vld [vmem:[%s346] ss:$8 sm:$0x3]
    %v349 = vlaneseq
    %v350 = vshrl.u32 %v349, 7
    %v351 = vsub.s32 0, %v350
    %v352 = vrot.slane %v347, %v351
    %v353 = vlaneseq
    %v354 = vshrl.u32 %v353, 7
    %v355 = vsub.s32 1, %v354
    %v356 = vrot.slane %v347, %v355
    %v359 = vmul.f32 %v341, %v352
    %v360 = vmul.f32 %v345, %v356
    %v363 = vcombine.low %v359, %v360
    %v365 = vunpack.c.l.s4 1983009808
    %v366 = vunpack.c.0.s8 %v365
    %v367 = vlaneseq
    %v368 = vshrl.u32 %v367, 7
    %v369 = vsub.s32 %v366, %v368
    %v370 = vrot.slane %v363, %v369
    %v372 = vadd.f32 %v335, %v370
    %s373 = sld [smem:[#allocation5]]
    %v376 = vunpack.c.l.s4 1983009808
    %v377 = vunpack.c.0.s8 %v376
    %v378 = vlaneseq
    %v379 = vshrl.u32 %v378, 7
    %v380 = vsub.s32 %v377, %v379
    %v381 = vrot.slane %v372, %v380
    %v382 = vcombine.high %v381, %v381
    %vm385 = vcmask 1041408
    %v386 = vsel %vm385, %v381, 0.0
    %v387 = vsel %vm385, %v382, 0.0
    %v388 = vadd.f32 %v386, %v387
    %389 = vadd.xlane.f32.xlu0 %v388
    %v390 = vpop.xlane.xlu0 %389
    %v391 = vrot.slane %v390, 4
    %v392 = vadd.f32 %v390, %v391
    %v393 = vrot.slane %v392, 2
    %v394 = vadd.f32 %v392, %v393
    %v395 = vrot.slane %v394, 1
    %v396 = vadd.f32 %v394, %v395
    %s397 = vtos %v396
    %s398 = sadd.f32 %s373, %s397
    %s399 = scalar_lea.smem [#allocation5], 0
    %400 = sst [smem:[%s399]] %s398
    %s401 = sld [smem:[#allocation5 + $0x1]]
    %v402 = vmul.f32 %v372, %v372
    %v405 = vunpack.c.l.s4 1983009808
    %v406 = vunpack.c.0.s8 %v405
    %v407 = vlaneseq
    %v408 = vshrl.u32 %v407, 7
    %v409 = vsub.s32 %v406, %v408
    %v410 = vrot.slane %v402, %v409
    %v411 = vcombine.high %v410, %v410
    %v414 = vsel %vm385, %v410, 0.0
    %v415 = vsel %vm385, %v411, 0.0
    %v416 = vadd.f32 %v414, %v415
    %417 = vadd.xlane.f32.xlu0 %v416
    %v418 = vpop.xlane.xlu0 %417
    %v419 = vrot.slane %v418, 4
    %v420 = vadd.f32 %v418, %v419
    %v421 = vrot.slane %v420, 2
    %v422 = vadd.f32 %v420, %v421
    %v423 = vrot.slane %v422, 1
    %v424 = vadd.f32 %v422, %v423
    %s425 = vtos %v424
    %s426 = sadd.f32 %s401, %s425
    %s427 = scalar_lea.smem [#allocation5], 1
    %428 = sst [smem:[%s427]] %s426
    %s429 = sld [smem:[#allocation5 + $0x2]]
    %v432 = vunpack.c.l.s4 1983009808
    %v433 = vunpack.c.0.s8 %v432
    %v434 = vlaneseq
    %v435 = vshrl.u32 %v434, 7
    %v436 = vsub.s32 %v433, %v435
    %v437 = vrot.slane %v40, %v436
    %v438 = vcombine.high %v437, %v437
    %v441 = vsel %vm385, %v437, 0.0
    %v442 = vsel %vm385, %v438, 0.0
    %v443 = vadd.f32 %v441, %v442
    %444 = vadd.xlane.f32.xlu0 %v443
    %v445 = vpop.xlane.xlu0 %444
    %v446 = vrot.slane %v445, 4
    %v447 = vadd.f32 %v445, %v446
    %v448 = vrot.slane %v447, 2
    %v449 = vadd.f32 %v447, %v448
    %v450 = vrot.slane %v449, 1
    %v451 = vadd.f32 %v449, %v450
    %s452 = vtos %v451
    %s453 = sadd.f32 %s429, %s452
    %s454 = scalar_lea.smem [#allocation5], 2
    %455 = sst [smem:[%s454]] %s453
    %s456 = sld [smem:[#allocation5 + $0x3]]
    %v457 = vmul.f32 %v40, %v40
    %v460 = vunpack.c.l.s4 1983009808
    %v461 = vunpack.c.0.s8 %v460
    %v462 = vlaneseq
    %v463 = vshrl.u32 %v462, 7
    %v464 = vsub.s32 %v461, %v463
    %v465 = vrot.slane %v457, %v464
    %v466 = vcombine.high %v465, %v465
    %v469 = vsel %vm385, %v465, 0.0
    %v470 = vsel %vm385, %v466, 0.0
    %v471 = vadd.f32 %v469, %v470
    %472 = vadd.xlane.f32.xlu0 %v471
    %v473 = vpop.xlane.xlu0 %472
    %v474 = vrot.slane %v473, 4
    %v475 = vadd.f32 %v473, %v474
    %v476 = vrot.slane %v475, 2
    %v477 = vadd.f32 %v475, %v476
    %v478 = vrot.slane %v477, 1
    %v479 = vadd.f32 %v477, %v478
    %s480 = vtos %v479
    %s481 = sadd.f32 %s456, %s480
    %s482 = scalar_lea.smem [#allocation5], 3
    %483 = sst [smem:[%s482]] %s481
    // Predicated region
    $region22: #{local_module_forward.2} parent=1 // pred_check
      _
    $region23: #{local_module_forward.2} parent=1 // pred_check_branch
      %485 = sbr.rel (0) target = $region25
    $region24: #{local_module_forward.2} parent=1 // pred_region
      %s487 = ssub.s32 16, 16
      %488 = vsyncadd [#allocation4], %s487
      %s490 = sshll.u32 %s3, 4
      %s491 = int_to_ptr.vmem [resolvable:$true] %s490
      %493 = dma.smem_to_vmem [#allocation5], 16, %s491, [#allocation4]
    $region25: #{local_module_forward.2} parent=1 // pred_fallthru
      _
    // Predicated region
    $region26: #{local_module_forward.2} parent=1 // pred_check
      _
    $region27: #{local_module_forward.2} parent=1 // pred_check_branch
      %495 = sbr.rel (0) target = $region29
    $region28: #{local_module_forward.2} parent=1 // pred_region
      %496 = dma.done [#allocation4], 16
    $region29: #{local_module_forward.2} parent=1 // pred_fallthru
      _
    %497 = sfence
    %498 = vsyncpa [#allocation3], 1
    %499 = vsyncpa [#allocation4], 1

// kernel: local_module_forward.3
$region0: #{local_module_forward.3}
  #allocation0 [shape = 'u32[]', space=smem, size = 0x4, offset = 0x4, fixed_abs, tag = 'smem constant byte address 0x4 - core index']
  #allocation1 [shape = 'u32[144,128]{1,0:T(1,128)}', space=vmem, size = 0x12000, scoped, tag = 'internal scratch']
  %s0 = inlined_call_operand.vmem [shape: f32[6], index: 0, kind: input, shape index: {}]
  %s1 = inlined_call_operand.vmem [shape: f32[9,256], index: 1, kind: input, shape index: {}]
  %s2 = inlined_call_operand.vmem [shape: f32[2,256], index: 2, kind: input, shape index: {}]
  %s3 = inlined_call_operand.vmem [shape: f32[2,256], index: 3, kind: output, shape index: {}]
  %s4 = sld [smem:[#allocation0]]
  $region26: #{local_module_forward.3} parent=0
    _
  %s6 = ssub.s32 1, %s4
  %s7 = scalar_select 0, %s6, %s4
  $region1: #{local_module_forward.3} parent=0
    #allocation2 [shape = 'u8[512]{0}', space=smem, size = 0x200, scoped, tag = 'input window, operand 0, single buffered']
    #allocation3 [shape = 's32[1]{0}', space=sflag, size = 0x4, scoped, tag = 'scoped memory for local_module_forward.3']
    %8 = vsyncpa [#allocation3], 0
    // Predicated region
    $region2: #{local_module_forward.3} parent=1 // pred_check
      _
    $region3: #{local_module_forward.3} parent=1 // pred_check_branch
      %10 = sbr.rel (0) target = $region5
    $region4: #{local_module_forward.3} parent=1 // pred_region
      %s12 = ssub.s32 16, 16
      %13 = vsyncadd [#allocation3], %s12
      %s15 = sshll.u32 %s0, 4
      %s16 = int_to_ptr.vmem [resolvable:$true] %s15
      %18 = dma.vmem_to_smem %s16, 16, [#allocation2], [#allocation3]
    $region5: #{local_module_forward.3} parent=1 // pred_fallthru
      _
    // Predicated region
    $region6: #{local_module_forward.3} parent=1 // pred_check
      _
    $region7: #{local_module_forward.3} parent=1 // pred_check_branch
      %20 = sbr.rel (0) target = $region9
    $region8: #{local_module_forward.3} parent=1 // pred_region
      _
    $region9: #{local_module_forward.3} parent=1 // pred_fallthru
      _
    // Predicated region
    $region10: #{local_module_forward.3} parent=1 // pred_check
      _
    $region11: #{local_module_forward.3} parent=1 // pred_check_branch
      %22 = sbr.rel (0) target = $region13
    $region12: #{local_module_forward.3} parent=1 // pred_region
      _
    $region13: #{local_module_forward.3} parent=1 // pred_fallthru
      _
    // Predicated region
    $region14: #{local_module_forward.3} parent=1 // pred_check
      _
    $region15: #{local_module_forward.3} parent=1 // pred_check_branch
      %24 = sbr.rel (0) target = $region17
    $region16: #{local_module_forward.3} parent=1 // pred_region
      %25 = dma.done [#allocation3], 16
    $region17: #{local_module_forward.3} parent=1 // pred_fallthru
      _
    %26 = sfence
    %v27 = vld [vmem:[%s2] sm:$0xf]
    %s28 = sld [smem:[#allocation2]]
    %v29 = vstv %s28
    %v30 = vmul.f32 %v27, %v29
    %s31 = sld [smem:[#allocation2 + $0x1]]
    %v32 = vstv %s31
    %v33 = vadd.f32 %v30, %v32
    %v34 = vmax.f32 %v33, 0.0
    %s35 = scalar_lea.vmem %s1, 4
    %v36 = vld [vmem:[%s35] ss:$8 sm:$0x3]
    %v38 = vlaneseq
    %v39 = vshrl.u32 %v38, 7
    %v40 = vsub.s32 0, %v39
    %v41 = vrot.slane %v36, %v40
    %v42 = vlaneseq
    %v43 = vshrl.u32 %v42, 7
    %v44 = vsub.s32 1, %v43
    %v45 = vrot.slane %v36, %v44
    %v46 = vcombine.low %v41, %v45
    %v48 = vunpack.c.l.s4 1983009808
    %v49 = vunpack.c.0.s8 %v48
    %v50 = vlaneseq
    %v51 = vshrl.u32 %v50, 7
    %v52 = vsub.s32 %v49, %v51
    %v53 = vrot.slane %v46, %v52
    %v55 = vmul.f32 %v34, %v53
    %v58 = vunpack.c.l.s4 1983009808
    %v59 = vunpack.c.0.s8 %v58
    %v60 = vlaneseq
    %v61 = vshrl.u32 %v60, 7
    %v62 = vsub.s32 %v59, %v61
    %v63 = vrot.slane %v34, %v62
    %v64 = vcombine.high %v63, %v63
    %65 = vrot.lane.b32.xlu0 %v64, 17
    %v66 = vpop.permute.xlu0 %65
    %68 = vrot.lane.b32.xlu0 %v63, 17
    %v69 = vpop.permute.xlu0 %68
    %vm70 = vcmask 138240
    %v71 = vsel %vm70, %v69, %v66
    %v74 = vsel %vm70, %v66, %v69
    %v75 = vld [vmem:[%s1] ss:$8 sm:$0x3]
    %v77 = vlaneseq
    %v78 = vshrl.u32 %v77, 7
    %v79 = vsub.s32 0, %v78
    %v80 = vrot.slane %v75, %v79
    %v81 = vlaneseq
    %v82 = vshrl.u32 %v81, 7
    %v83 = vsub.s32 1, %v82
    %v84 = vrot.slane %v75, %v83
    %v87 = vmul.f32 %v74, %v80
    %v88 = vmul.f32 %v71, %v84
    %v91 = vcombine.low %v87, %v88
    %v93 = vunpack.c.l.s4 1983009808
    %v94 = vunpack.c.0.s8 %v93
    %v95 = vlaneseq
    %v96 = vshrl.u32 %v95, 7
    %v97 = vsub.s32 %v94, %v96
    %v98 = vrot.slane %v91, %v97
    %v100 = vadd.f32 %v55, %v98
    %101 = vrot.lane.b32.xlu0 %v64, 16
    %v102 = vpop.permute.xlu0 %101
    %104 = vrot.lane.b32.xlu0 %v63, 16
    %v105 = vpop.permute.xlu0 %104
    %vm106 = vcmask 130048
    %v107 = vsel %vm106, %v105, %v102
    %v110 = vsel %vm106, %v102, %v105
    %s111 = scalar_lea.vmem %s1, 1
    %v112 = vld [vmem:[%s111] ss:$8 sm:$0x3]
    %v114 = vlaneseq
    %v115 = vshrl.u32 %v114, 7
    %v116 = vsub.s32 0, %v115
    %v117 = vrot.slane %v112, %v116
    %v118 = vlaneseq
    %v119 = vshrl.u32 %v118, 7
    %v120 = vsub.s32 1, %v119
    %v121 = vrot.slane %v112, %v120
    %v124 = vmul.f32 %v110, %v117
    %v125 = vmul.f32 %v107, %v121
    %v128 = vcombine.low %v124, %v125
    %v130 = vunpack.c.l.s4 1983009808
    %v131 = vunpack.c.0.s8 %v130
    %v132 = vlaneseq
    %v133 = vshrl.u32 %v132, 7
    %v134 = vsub.s32 %v131, %v133
    %v135 = vrot.slane %v128, %v134
    %v137 = vadd.f32 %v100, %v135
    %138 = vrot.lane.b32.xlu0 %v64, 15
    %v139 = vpop.permute.xlu0 %138
    %141 = vrot.lane.b32.xlu0 %v63, 15
    %v142 = vpop.permute.xlu0 %141
    %vm143 = vcmask 121856
    %v144 = vsel %vm143, %v142, %v139
    %v147 = vsel %vm143, %v139, %v142
    %s148 = scalar_lea.vmem %s1, 2
    %v149 = vld [vmem:[%s148] ss:$8 sm:$0x3]
    %v151 = vlaneseq
    %v152 = vshrl.u32 %v151, 7
    %v153 = vsub.s32 0, %v152
    %v154 = vrot.slane %v149, %v153
    %v155 = vlaneseq
    %v156 = vshrl.u32 %v155, 7
    %v157 = vsub.s32 1, %v156
    %v158 = vrot.slane %v149, %v157
    %v161 = vmul.f32 %v147, %v154
    %v162 = vmul.f32 %v144, %v158
    %v165 = vcombine.low %v161, %v162
    %v167 = vunpack.c.l.s4 1983009808
    %v168 = vunpack.c.0.s8 %v167
    %v169 = vlaneseq
    %v170 = vshrl.u32 %v169, 7
    %v171 = vsub.s32 %v168, %v170
    %v172 = vrot.slane %v165, %v171
    %v174 = vadd.f32 %v137, %v172
    %175 = vrot.lane.b32.xlu0 %v64, 1
    %v176 = vpop.permute.xlu0 %175
    %178 = vrot.lane.b32.xlu0 %v63, 1
    %v179 = vpop.permute.xlu0 %178
    %vm180 = vcmask 7168
    %v181 = vsel %vm180, %v179, %v176
    %v184 = vsel %vm180, %v176, %v179
    %s185 = scalar_lea.vmem %s1, 3
    %v186 = vld [vmem:[%s185] ss:$8 sm:$0x3]
    %v188 = vlaneseq
    %v189 = vshrl.u32 %v188, 7
    %v190 = vsub.s32 0, %v189
    %v191 = vrot.slane %v186, %v190
    %v192 = vlaneseq
    %v193 = vshrl.u32 %v192, 7
    %v194 = vsub.s32 1, %v193
    %v195 = vrot.slane %v186, %v194
    %v198 = vmul.f32 %v184, %v191
    %v199 = vmul.f32 %v181, %v195
    %v202 = vcombine.low %v198, %v199
    %v204 = vunpack.c.l.s4 1983009808
    %v205 = vunpack.c.0.s8 %v204
    %v206 = vlaneseq
    %v207 = vshrl.u32 %v206, 7
    %v208 = vsub.s32 %v205, %v207
    %v209 = vrot.slane %v202, %v208
    %v211 = vadd.f32 %v174, %v209
    %212 = vrot.lane.b32.xlu0 %v63, 127
    %v213 = vpop.permute.xlu0 %212
    %214 = vrot.lane.b32.xlu0 %v64, 127
    %v215 = vpop.permute.xlu0 %214
    %vm216 = vcmask 1039360
    %v217 = vsel %vm216, %v213, %v215
    %v221 = vsel %vm216, %v215, %v213
    %s222 = scalar_lea.vmem %s1, 5
    %v223 = vld [vmem:[%s222] ss:$8 sm:$0x3]
    %v225 = vlaneseq
    %v226 = vshrl.u32 %v225, 7
    %v227 = vsub.s32 0, %v226
    %v228 = vrot.slane %v223, %v227
    %v229 = vlaneseq
    %v230 = vshrl.u32 %v229, 7
    %v231 = vsub.s32 1, %v230
    %v232 = vrot.slane %v223, %v231
    %v235 = vmul.f32 %v217, %v228
    %v236 = vmul.f32 %v221, %v232
    %v239 = vcombine.low %v235, %v236
    %v241 = vunpack.c.l.s4 1983009808
    %v242 = vunpack.c.0.s8 %v241
    %v243 = vlaneseq
    %v244 = vshrl.u32 %v243, 7
    %v245 = vsub.s32 %v242, %v244
    %v246 = vrot.slane %v239, %v245
    %v248 = vadd.f32 %v211, %v246
    %249 = vrot.lane.b32.xlu0 %v63, 113
    %v250 = vpop.permute.xlu0 %249
    %251 = vrot.lane.b32.xlu0 %v64, 113
    %v252 = vpop.permute.xlu0 %251
    %vm253 = vcmask 924672
    %v254 = vsel %vm253, %v250, %v252
    %v258 = vsel %vm253, %v252, %v250
    %s259 = scalar_lea.vmem %s1, 6
    %v260 = vld [vmem:[%s259] ss:$8 sm:$0x3]
    %v262 = vlaneseq
    %v263 = vshrl.u32 %v262, 7
    %v264 = vsub.s32 0, %v263
    %v265 = vrot.slane %v260, %v264
    %v266 = vlaneseq
    %v267 = vshrl.u32 %v266, 7
    %v268 = vsub.s32 1, %v267
    %v269 = vrot.slane %v260, %v268
    %v272 = vmul.f32 %v254, %v265
    %v273 = vmul.f32 %v258, %v269
    %v276 = vcombine.low %v272, %v273
    %v278 = vunpack.c.l.s4 1983009808
    %v279 = vunpack.c.0.s8 %v278
    %v280 = vlaneseq
    %v281 = vshrl.u32 %v280, 7
    %v282 = vsub.s32 %v279, %v281
    %v283 = vrot.slane %v276, %v282
    %v285 = vadd.f32 %v248, %v283
    %286 = vrot.lane.b32.xlu0 %v63, 112
    %v287 = vpop.permute.xlu0 %286
    %288 = vrot.lane.b32.xlu0 %v64, 112
    %v289 = vpop.permute.xlu0 %288
    %vm290 = vcmask 916480
    %v291 = vsel %vm290, %v287, %v289
    %v295 = vsel %vm290, %v289, %v287
    %s296 = scalar_lea.vmem %s1, 7
    %v297 = vld [vmem:[%s296] ss:$8 sm:$0x3]
    %v299 = vlaneseq
    %v300 = vshrl.u32 %v299, 7
    %v301 = vsub.s32 0, %v300
    %v302 = vrot.slane %v297, %v301
    %v303 = vlaneseq
    %v304 = vshrl.u32 %v303, 7
    %v305 = vsub.s32 1, %v304
    %v306 = vrot.slane %v297, %v305
    %v309 = vmul.f32 %v291, %v302
    %v310 = vmul.f32 %v295, %v306
    %v313 = vcombine.low %v309, %v310
    %v315 = vunpack.c.l.s4 1983009808
    %v316 = vunpack.c.0.s8 %v315
    %v317 = vlaneseq
    %v318 = vshrl.u32 %v317, 7
    %v319 = vsub.s32 %v316, %v318
    %v320 = vrot.slane %v313, %v319
    %v322 = vadd.f32 %v285, %v320
    %323 = vrot.lane.b32.xlu0 %v63, 111
    %v324 = vpop.permute.xlu0 %323
    %325 = vrot.lane.b32.xlu0 %v64, 111
    %v326 = vpop.permute.xlu0 %325
    %vm327 = vcmask 908288
    %v328 = vsel %vm327, %v324, %v326
    %v332 = vsel %vm327, %v326, %v324
    %s333 = scalar_lea.vmem %s1, 16
    %v334 = vld [vmem:[%s333] ss:$8 sm:$0x3]
    %v336 = vlaneseq
    %v337 = vshrl.u32 %v336, 7
    %v338 = vsub.s32 0, %v337
    %v339 = vrot.slane %v334, %v338
    %v340 = vlaneseq
    %v341 = vshrl.u32 %v340, 7
    %v342 = vsub.s32 1, %v341
    %v343 = vrot.slane %v334, %v342
    %v346 = vmul.f32 %v328, %v339
    %v347 = vmul.f32 %v332, %v343
    %v350 = vcombine.low %v346, %v347
    %v352 = vunpack.c.l.s4 1983009808
    %v353 = vunpack.c.0.s8 %v352
    %v354 = vlaneseq
    %v355 = vshrl.u32 %v354, 7
    %v356 = vsub.s32 %v353, %v355
    %v357 = vrot.slane %v350, %v356
    %v359 = vadd.f32 %v322, %v357
    %s360 = sld [smem:[#allocation2 + $0x2]]
    %v361 = vstv %s360
    %v362 = vmul.f32 %v359, %v361
    %s363 = sld [smem:[#allocation2 + $0x3]]
    %v364 = vstv %s363
    %v365 = vadd.f32 %v362, %v364
    %v366 = vmax.f32 %v365, 0.0
    %s367 = sld [smem:[#allocation2 + $0x4]]
    %v368 = vstv %s367
    %v369 = vmul.f32 %v27, %v368
    %s370 = sld [smem:[#allocation2 + $0x5]]
    %v371 = vstv %s370
    %v372 = vadd.f32 %v369, %v371
    %v373 = vadd.f32 %v366, %v372
    %v374 = vmax.f32 %v373, 0.0
    %375 = vst [vmem:[%s3] sm:$0xf] %v374
    // Predicated region
    $region18: #{local_module_forward.3} parent=1 // pred_check
      _
    $region19: #{local_module_forward.3} parent=1 // pred_check_branch
      %377 = sbr.rel (0) target = $region21
    $region20: #{local_module_forward.3} parent=1 // pred_region
      _
    $region21: #{local_module_forward.3} parent=1 // pred_fallthru
      _
    // Predicated region
    $region22: #{local_module_forward.3} parent=1 // pred_check
      _
    $region23: #{local_module_forward.3} parent=1 // pred_check_branch
      %379 = sbr.rel (0) target = $region25
    $region24: #{local_module_forward.3} parent=1 // pred_region
      _
    $region25: #{local_module_forward.3} parent=1 // pred_fallthru
      _
    %380 = vsyncpa [#allocation3], 1

</llo_original>
